<compile_context>
chip_gen: v6e
topology: v6e:2x2x1
jax: 0.10.0
libtpu: 0.0.40
codegen_flags: <defaults>
</compile_context>

<pallas_src>
import jax
import jax.numpy as jnp
from jax.experimental import pallas as pl
from jax.experimental.pallas import tpu as pltpu


def _disc_kernel(x_ref,
                 w1_ref, b1_ref,
                 w2_ref, b2_ref,
                 wo_ref, bo_ref,
                 o_ref):
    """Fused 2x(Linear + LeakyReLU + LayerNorm-normalize) + output Linear.

    LayerNorm affines are pre-folded into (w2, b2) and (wo, bo) by the wrapper.
    """
    # Hoist parameter loads once.
    w1 = w1_ref[...]
    w2 = w2_ref[...]
    wo = wo_ref[...]
    b1 = b1_ref[...]   # f32
    b2 = b2_ref[...]   # f32 (folded: be1 @ w2 + b2)
    bo = bo_ref[...]   # f32 (folded: be2 @ wo + bo)

    mm_dtype = w1.dtype  # matmul operand dtype (bf16 or f32); accumulation is f32

    def hidden_block(h_in, w, b):
        # Linear (MXU, f32 accumulation)
        h = jnp.dot(h_in, w, preferred_element_type=jnp.float32) + b
        # LeakyReLU (torch default negative_slope = 0.01) as a single vmax
        h = jnp.maximum(h, 0.01 * h)
        # LayerNorm normalization (two-pass moments, eps=1e-5, f32 math).
        mu = jnp.mean(h, axis=-1, keepdims=True)
        c = h - mu
        var = jnp.mean(c * c, axis=-1, keepdims=True)
        return c * jax.lax.rsqrt(var + 1e-5)

    n1 = hidden_block(x_ref[...].astype(mm_dtype), w1, b1)
    n2 = hidden_block(n1.astype(mm_dtype), w2, b2)

    out = jnp.dot(n2.astype(mm_dtype), wo, preferred_element_type=jnp.float32) + bo
    o_ref[...] = out.astype(o_ref.dtype)


def adversarial_discriminator_forward(x, params, *, block_b=256,
                                      matmul_dtype=jnp.bfloat16):
    """Forward pass of AdversarialDiscriminator.

    x: [B, d_model]. params: dict from init_params (un-folded torch-like params).
    matmul_dtype: MXU operand dtype (default bf16, the native MXU rate on
    v5e/v6e/v7x). None keeps f32 operands. Accumulation / LN math is always f32.
    """
    B, D = x.shape
    C = params["wo"].shape[1]
    f32 = jnp.float32

    # ---- Fold LayerNorm affines into the next linear layer (exact, in f32) ----
    g1 = params["g1"].astype(f32)
    be1 = params["be1"].astype(f32)
    g2 = params["g2"].astype(f32)
    be2 = params["be2"].astype(f32)

    w1 = params["w1"].astype(f32)
    b1 = params["b1"].astype(f32)
    w2 = g1.reshape(D, 1) * params["w2"].astype(f32)          # scale rows by gamma1
    b2 = be1 @ params["w2"].astype(f32) + params["b2"].astype(f32)
    wo = g2.reshape(D, 1) * params["wo"].astype(f32)          # scale rows by gamma2
    bo = be2 @ params["wo"].astype(f32) + params["bo"].astype(f32)

    # ---- Lane-dense output padding (multiple of 128); sliced back at the end ----
    C_pad = 128 * pl.cdiv(max(C, 1), 128)
    if C_pad != C:
        wo = jnp.pad(wo, ((0, 0), (0, C_pad - C)))
        bo = jnp.pad(bo, ((0, 0), (0, C_pad - C)))

    # ---- Matmul operand dtype (weights cast once; x cast inside the kernel) ----
    mm_dtype = jnp.dtype(f32) if matmul_dtype is None else jnp.dtype(matmul_dtype)
    w1 = w1.astype(mm_dtype)
    w2 = w2.astype(mm_dtype)
    wo = wo.astype(mm_dtype)
    # Biases stay f32 (added to the f32 accumulator).

    # Cheap (mostly-padding) writeback when the MXU runs bf16; cast back below.
    out_dtype = mm_dtype if mm_dtype.itemsize == 2 else jnp.dtype(f32)

    # ---- Batch tiling: sublane-granular, no full pad copy of x ----
    x_itemsize = jnp.dtype(x.dtype).itemsize
    gran = 8 * max(1, 4 // x_itemsize)          # 8 (f32) / 16 (bf16) sublane packing
    n_rows = gran * pl.cdiv(B, gran)
    TB = min(block_b, n_rows)
    # Give the ("parallel",) batch grid >= 2 steps when the batch allows, so both
    # v7x TensorCores get work.
    if n_rows > gran and pl.cdiv(n_rows, TB) < 2:
        TB = gran * pl.cdiv(pl.cdiv(n_rows, 2), gran)
    grid = (pl.cdiv(B, TB),)

    const2 = lambda i: (0, 0)
    in_specs = [
        pl.BlockSpec((TB, D), lambda i: (i, 0)),   # x tile (pipelined over batch)
        pl.BlockSpec((D, D), const2),              # w1 (resident)
        pl.BlockSpec((1, D), const2),              # b1
        pl.BlockSpec((D, D), const2),              # w2 (gamma1-folded)
        pl.BlockSpec((1, D), const2),              # b2 (beta1-folded)
        pl.BlockSpec((D, C_pad), const2),          # wo (gamma2-folded, lane-dense)
        pl.BlockSpec((1, C_pad), const2),          # bo (beta2-folded)
    ]
    out_spec = pl.BlockSpec((TB, C_pad), lambda i: (i, 0))

    # ---- VMEM budget / cost hints ----
    mm_is = mm_dtype.itemsize
    out_is = jnp.dtype(out_dtype).itemsize
    w_bytes = (2 * D * D + D * C_pad) * mm_is
    bias_bytes = 8 * (2 * D + C_pad) * 4           # (1, .) blocks pad to 8 sublanes
    tile_bytes = TB * D * x_itemsize + TB * C_pad * out_is
    vmem_est = 2 * (w_bytes + bias_bytes + tile_bytes) + 6 * TB * D * 4
    vmem_limit = int(min(max(vmem_est * 3 // 2, 32 << 20), 100 << 20))

    cost = pl.CostEstimate(
        flops=2 * B * D * (2 * D + C_pad),
        transcendentals=2 * B,                     # one rsqrt per row per hidden layer
        bytes_accessed=B * D * x_itemsize + w_bytes + bias_bytes + B * C_pad * out_is,
    )

    out = pl.pallas_call(
        _disc_kernel,
        out_shape=jax.ShapeDtypeStruct((B, C_pad), out_dtype),
        grid=grid,
        in_specs=in_specs,
        out_specs=out_spec,
        compiler_params=pltpu.CompilerParams(
            dimension_semantics=("parallel",),     # batch split across TCs on v7x
            vmem_limit_bytes=vmem_limit),
        cost_estimate=cost,
    )(x, w1, b1, w2, b2, wo, bo)

    return out[:, :C].astype(x.dtype)


def init_params(key, d_model, n_cls):
    """Deterministic synthetic init (roughly torch-Linear-like uniform scale)."""
    ks = jax.random.split(key, 6)
    s = 1.0 / jnp.sqrt(d_model)

    def lin(k, fan_in, fan_out):
        kw, kb = jax.random.split(k)
        w = jax.random.uniform(kw, (fan_in, fan_out), jnp.float32, -s, s)  # [in, out]
        b = jax.random.uniform(kb, (1, fan_out), jnp.float32, -s, s)
        return w, b

    w1, b1 = lin(ks[0], d_model, d_model)
    w2, b2 = lin(ks[1], d_model, d_model)
    wo, bo = lin(ks[2], d_model, n_cls)
    # LayerNorm affine params (perturbed from torch defaults so the affine path
    # and its folding are actually exercised).
    g1 = 1.0 + 0.1 * jax.random.normal(ks[3], (1, d_model), jnp.float32)
    be1 = 0.1 * jax.random.normal(ks[4], (1, d_model), jnp.float32)
    g2 = 1.0 + 0.1 * jax.random.normal(ks[5], (1, d_model), jnp.float32)
    be2 = jnp.zeros((1, d_model), jnp.float32)
    return {"w1": w1, "b1": b1, "g1": g1, "be1": be1,
            "w2": w2, "b2": b2, "g2": g2, "be2": be2,
            "wo": wo, "bo": bo}


def _reference_forward(x, p):
    """Pure-JAX reference mirroring the PyTorch forward (un-folded params)."""
    def block(h, w, b, g, be):
        h = h @ w + b
        h = jnp.where(h >= 0, h, 0.01 * h)
        mu = h.mean(-1, keepdims=True)
        var = ((h - mu) ** 2).mean(-1, keepdims=True)
        return (h - mu) / jnp.sqrt(var + 1e-5) * g + be
    h = block(x, p["w1"], p["b1"], p["g1"], p["be1"])
    h = block(h, p["w2"], p["b2"], p["g2"], p["be2"])
    return h @ p["wo"] + p["bo"]


if __name__ == "__main__":
    key = jax.random.PRNGKey(0)
    kx, kp = jax.random.split(key)

    batch, d_model, n_cls = 8, 128, 16
    x = jax.random.normal(kx, (batch, d_model), jnp.float32)
    params = init_params(kp, d_model, n_cls)
    ref = _reference_forward(x, params)

    # f32 MXU operands: tight correctness check (validates the LN-affine fold).
    out_f32 = adversarial_discriminator_forward(x, params, matmul_dtype=None)
    out_f32 = jax.block_until_ready(out_f32)
    assert out_f32.shape == (batch, n_cls), out_f32.shape
    assert jnp.allclose(out_f32, ref, atol=2e-3, rtol=2e-3), "mismatch vs reference (f32)"

    # bf16 MXU operands (default fast path): loose accuracy check vs f32 reference.
    out_bf16 = adversarial_discriminator_forward(x, params)
    out_bf16 = jax.block_until_ready(out_bf16)
    assert out_bf16.shape == (batch, n_cls), out_bf16.shape
    assert bool(jnp.all(jnp.isfinite(out_bf16))), "non-finite output (bf16)"
    assert jnp.allclose(out_bf16, ref, atol=1e-1, rtol=1e-1), "mismatch vs reference (bf16)"

    print("KERNEL_OK")
</pallas_src>

<mosaic_0001>
module attributes {stable_mosaic.version = 11 : i64} {
  func.func @_disc_kernel(%arg0: i32, %arg1: memref<8x128xf32, #tpu.memory_space<vmem>>, %arg2: memref<128x128xf32, #tpu.memory_space<vmem>>, %arg3: memref<1x128xf32, #tpu.memory_space<vmem>>, %arg4: memref<128x128xf32, #tpu.memory_space<vmem>>, %arg5: memref<1x128xf32, #tpu.memory_space<vmem>>, %arg6: memref<128x128xf32, #tpu.memory_space<vmem>>, %arg7: memref<1x128xf32, #tpu.memory_space<vmem>>, %arg8: memref<8x128xf32, #tpu.memory_space<vmem>>) attributes {dimension_semantics = [#tpu.dimension_semantics<parallel>], iteration_bounds = array<i64: 1>, scalar_prefetch = 0 : i64, scratch_operands = 0 : i64, tpu.core_type = #tpu.core_type<tc>, window_params = [{transform_indices = @transform_0, window_bounds = array<i64: 8, 128>}, {pipeline_mode = #tpu.pipeline_mode<synchronous>, transform_indices = @transform_1, window_bounds = array<i64: 128, 128>}, {pipeline_mode = #tpu.pipeline_mode<synchronous>, transform_indices = @transform_2, window_bounds = array<i64: 1, 128>}, {pipeline_mode = #tpu.pipeline_mode<synchronous>, transform_indices = @transform_3, window_bounds = array<i64: 128, 128>}, {pipeline_mode = #tpu.pipeline_mode<synchronous>, transform_indices = @transform_4, window_bounds = array<i64: 1, 128>}, {pipeline_mode = #tpu.pipeline_mode<synchronous>, transform_indices = @transform_5, window_bounds = array<i64: 128, 128>}, {pipeline_mode = #tpu.pipeline_mode<synchronous>, transform_indices = @transform_6, window_bounds = array<i64: 1, 128>}, {transform_indices = @transform_7, window_bounds = array<i64: 8, 128>}]} {
    %c0 = arith.constant 0 : index
    %c0_0 = arith.constant 0 : index
    %0 = vector.load %arg2[%c0, %c0_0] : memref<128x128xf32, #tpu.memory_space<vmem>>, vector<128x128xf32>
    %c0_1 = arith.constant 0 : index
    %c0_2 = arith.constant 0 : index
    %1 = vector.load %arg4[%c0_1, %c0_2] : memref<128x128xf32, #tpu.memory_space<vmem>>, vector<128x128xf32>
    %c0_3 = arith.constant 0 : index
    %c0_4 = arith.constant 0 : index
    %2 = vector.load %arg6[%c0_3, %c0_4] : memref<128x128xf32, #tpu.memory_space<vmem>>, vector<128x128xf32>
    %c0_5 = arith.constant 0 : index
    %c0_6 = arith.constant 0 : index
    %3 = vector.load %arg3[%c0_5, %c0_6] : memref<1x128xf32, #tpu.memory_space<vmem>>, vector<1x128xf32>
    %c0_7 = arith.constant 0 : index
    %c0_8 = arith.constant 0 : index
    %4 = vector.load %arg5[%c0_7, %c0_8] : memref<1x128xf32, #tpu.memory_space<vmem>>, vector<1x128xf32>
    %c0_9 = arith.constant 0 : index
    %c0_10 = arith.constant 0 : index
    %5 = vector.load %arg7[%c0_9, %c0_10] : memref<1x128xf32, #tpu.memory_space<vmem>>, vector<1x128xf32>
    %c0_11 = arith.constant 0 : index
    %c0_12 = arith.constant 0 : index
    %6 = vector.load %arg1[%c0_11, %c0_12] : memref<8x128xf32, #tpu.memory_space<vmem>>, vector<8x128xf32>
    %cst = arith.constant dense<0.000000e+00> : vector<8x128xf32>
    %7 = tpu.matmul %6, %0, %cst {dimension_numbers = #tpu.dot_dimension_numbers<[1], [0], [0], [1], [0, 0, 1, 1], [], []>} : vector<8x128xf32>, vector<128x128xf32>, vector<8x128xf32> -> vector<8x128xf32>
    %8 = vector.broadcast %3 : vector<1x128xf32> to vector<8x128xf32>
    %9 = arith.addf %7, %8 : vector<8x128xf32>
    %cst_13 = arith.constant 0.00999999977 : f32
    %10 = vector.broadcast %cst_13 : f32 to vector<8x128xf32>
    %11 = arith.mulf %10, %9 : vector<8x128xf32>
    %12 = arith.maximumf %9, %11 : vector<8x128xf32>
    %cst_14 = arith.constant dense<0.000000e+00> : vector<8xf32>
    %13 = vector.multi_reduction <add>, %12, %cst_14 [1] : vector<8x128xf32> to vector<8xf32>
    %14 = vector.shape_cast %13 : vector<8xf32> to vector<8x1xf32>
    %cst_15 = arith.constant 1.280000e+02 : f32
    %15 = vector.broadcast %cst_15 : f32 to vector<8x1xf32>
    %16 = arith.divf %14, %15 : vector<8x1xf32>
    %17 = vector.broadcast %16 : vector<8x1xf32> to vector<8x128xf32>
    %18 = arith.subf %12, %17 : vector<8x128xf32>
    %19 = arith.mulf %18, %18 : vector<8x128xf32>
    %cst_16 = arith.constant dense<0.000000e+00> : vector<8xf32>
    %20 = vector.multi_reduction <add>, %19, %cst_16 [1] : vector<8x128xf32> to vector<8xf32>
    %21 = vector.shape_cast %20 : vector<8xf32> to vector<8x1xf32>
    %cst_17 = arith.constant 1.280000e+02 : f32
    %22 = vector.broadcast %cst_17 : f32 to vector<8x1xf32>
    %23 = arith.divf %21, %22 : vector<8x1xf32>
    %cst_18 = arith.constant 9.99999974E-6 : f32
    %24 = vector.broadcast %cst_18 : f32 to vector<8x1xf32>
    %25 = arith.addf %23, %24 : vector<8x1xf32>
    %26 = math.rsqrt %25 : vector<8x1xf32>
    %27 = vector.broadcast %26 : vector<8x1xf32> to vector<8x128xf32>
    %28 = arith.mulf %18, %27 : vector<8x128xf32>
    %cst_19 = arith.constant dense<0.000000e+00> : vector<8x128xf32>
    %29 = tpu.matmul %28, %1, %cst_19 {dimension_numbers = #tpu.dot_dimension_numbers<[1], [0], [0], [1], [0, 0, 1, 1], [], []>} : vector<8x128xf32>, vector<128x128xf32>, vector<8x128xf32> -> vector<8x128xf32>
    %30 = vector.broadcast %4 : vector<1x128xf32> to vector<8x128xf32>
    %31 = arith.addf %29, %30 : vector<8x128xf32>
    %cst_20 = arith.constant 0.00999999977 : f32
    %32 = vector.broadcast %cst_20 : f32 to vector<8x128xf32>
    %33 = arith.mulf %32, %31 : vector<8x128xf32>
    %34 = arith.maximumf %31, %33 : vector<8x128xf32>
    %cst_21 = arith.constant dense<0.000000e+00> : vector<8xf32>
    %35 = vector.multi_reduction <add>, %34, %cst_21 [1] : vector<8x128xf32> to vector<8xf32>
    %36 = vector.shape_cast %35 : vector<8xf32> to vector<8x1xf32>
    %cst_22 = arith.constant 1.280000e+02 : f32
    %37 = vector.broadcast %cst_22 : f32 to vector<8x1xf32>
    %38 = arith.divf %36, %37 : vector<8x1xf32>
    %39 = vector.broadcast %38 : vector<8x1xf32> to vector<8x128xf32>
    %40 = arith.subf %34, %39 : vector<8x128xf32>
    %41 = arith.mulf %40, %40 : vector<8x128xf32>
    %cst_23 = arith.constant dense<0.000000e+00> : vector<8xf32>
    %42 = vector.multi_reduction <add>, %41, %cst_23 [1] : vector<8x128xf32> to vector<8xf32>
    %43 = vector.shape_cast %42 : vector<8xf32> to vector<8x1xf32>
    %cst_24 = arith.constant 1.280000e+02 : f32
    %44 = vector.broadcast %cst_24 : f32 to vector<8x1xf32>
    %45 = arith.divf %43, %44 : vector<8x1xf32>
    %cst_25 = arith.constant 9.99999974E-6 : f32
    %46 = vector.broadcast %cst_25 : f32 to vector<8x1xf32>
    %47 = arith.addf %45, %46 : vector<8x1xf32>
    %48 = math.rsqrt %47 : vector<8x1xf32>
    %49 = vector.broadcast %48 : vector<8x1xf32> to vector<8x128xf32>
    %50 = arith.mulf %40, %49 : vector<8x128xf32>
    %cst_26 = arith.constant dense<0.000000e+00> : vector<8x128xf32>
    %51 = tpu.matmul %50, %2, %cst_26 {dimension_numbers = #tpu.dot_dimension_numbers<[1], [0], [0], [1], [0, 0, 1, 1], [], []>} : vector<8x128xf32>, vector<128x128xf32>, vector<8x128xf32> -> vector<8x128xf32>
    %52 = vector.broadcast %5 : vector<1x128xf32> to vector<8x128xf32>
    %53 = arith.addf %51, %52 : vector<8x128xf32>
    %c0_27 = arith.constant 0 : index
    %c0_28 = arith.constant 0 : index
    %54 = vector.load %arg8[%c0_27, %c0_28] : memref<8x128xf32, #tpu.memory_space<vmem>>, vector<8x128xf32>
    tpu.vector_store %arg8[%c0_27, %c0_28], %53 {strides = array<i32>} : memref<8x128xf32, #tpu.memory_space<vmem>>, vector<8x128xf32>,
    return
  }
  func.func @transform_0(%arg0: i32) -> (i32, i32) {
    %c0_i32 = arith.constant 0 : i32
    %c0_i32_0 = arith.constant 0 : i32
    return %arg0, %c0_i32 : i32, i32
  }
  func.func @transform_1(%arg0: i32) -> (i32, i32) {
    %c0_i32 = arith.constant 0 : i32
    %c0_i32_0 = arith.constant 0 : i32
    %c0_i32_1 = arith.constant 0 : i32
    return %c0_i32, %c0_i32_0 : i32, i32
  }
  func.func @transform_2(%arg0: i32) -> (i32, i32) {
    %c0_i32 = arith.constant 0 : i32
    %c0_i32_0 = arith.constant 0 : i32
    %c0_i32_1 = arith.constant 0 : i32
    return %c0_i32, %c0_i32_0 : i32, i32
  }
  func.func @transform_3(%arg0: i32) -> (i32, i32) {
    %c0_i32 = arith.constant 0 : i32
    %c0_i32_0 = arith.constant 0 : i32
    %c0_i32_1 = arith.constant 0 : i32
    return %c0_i32, %c0_i32_0 : i32, i32
  }
  func.func @transform_4(%arg0: i32) -> (i32, i32) {
    %c0_i32 = arith.constant 0 : i32
    %c0_i32_0 = arith.constant 0 : i32
    %c0_i32_1 = arith.constant 0 : i32
    return %c0_i32, %c0_i32_0 : i32, i32
  }
  func.func @transform_5(%arg0: i32) -> (i32, i32) {
    %c0_i32 = arith.constant 0 : i32
    %c0_i32_0 = arith.constant 0 : i32
    %c0_i32_1 = arith.constant 0 : i32
    return %c0_i32, %c0_i32_0 : i32, i32
  }
  func.func @transform_6(%arg0: i32) -> (i32, i32) {
    %c0_i32 = arith.constant 0 : i32
    %c0_i32_0 = arith.constant 0 : i32
    %c0_i32_1 = arith.constant 0 : i32
    return %c0_i32, %c0_i32_0 : i32, i32
  }
  func.func @transform_7(%arg0: i32) -> (i32, i32) {
    %c0_i32 = arith.constant 0 : i32
    %c0_i32_0 = arith.constant 0 : i32
    return %arg0, %c0_i32 : i32, i32
  }
}

</mosaic_0001>

<llo_original>
// kernel: tpu_custom_call.1
$region0: #{tpu_custom_call.1}
  #allocation0 [shape = 'u32[]', space=smem, size = 0x4, offset = 0x4, fixed_abs, tag = 'smem constant byte address 0x4 - core index']
  #allocation1 [shape = 'u32[144,128]{1,0:T(1,128)}', space=vmem, size = 0x12000, scoped, tag = 'internal scratch']
  %s0 = inlined_call_operand.hbm [shape: f32[8,128], index: 0, kind: input, shape index: {}]
  %s1 = inlined_call_operand.hbm [shape: f32[128,128], index: 1, kind: input, shape index: {}]
  %s2 = inlined_call_operand.vmem [shape: f32[1,128], index: 2, kind: input, shape index: {}]
  %s3 = inlined_call_operand.hbm [shape: f32[128,128], index: 3, kind: input, shape index: {}]
  %s4 = inlined_call_operand.vmem [shape: f32[1,128], index: 4, kind: input, shape index: {}]
  %s5 = inlined_call_operand.hbm [shape: f32[128,128], index: 5, kind: input, shape index: {}]
  %s6 = inlined_call_operand.vmem [shape: f32[1,128], index: 6, kind: input, shape index: {}]
  %s7 = inlined_call_operand.hbm [shape: f32[8,128], index: 7, kind: output, shape index: {}]
  %s8 = sld [smem:[#allocation0]]
  $region54: #{tpu_custom_call.1} parent=0
    _
  %s10 = ssub.s32 1, %s8
  %s11 = scalar_select 0, %s10, %s8
  $region1: #{tpu_custom_call.1} parent=0
    #allocation2 [shape = 'u8[4096]{0}', space=vmem, size = 0x1000, scoped, tag = 'input window, operand 0, single buffered']
    #allocation3 [shape = 's32[1]{0}', space=sflag, size = 0x4, scoped, tag = 'scoped memory for tpu_custom_call.1']
    #allocation4 [shape = 's32[1]{0}', space=sflag, size = 0x4, scoped, tag = 'scoped memory for tpu_custom_call.1']
    #allocation5 [shape = 'u8[65536]{0}', space=vmem, size = 0x10000, scoped, tag = 'input window, operand 1, single buffered']
    #allocation6 [shape = 's32[1]{0}', space=sflag, size = 0x4, scoped, tag = 'scoped memory for tpu_custom_call.1']
    #allocation7 [shape = 'u8[65536]{0}', space=vmem, size = 0x10000, scoped, tag = 'input window, operand 3, single buffered']
    #allocation8 [shape = 'u8[65536]{0}', space=vmem, size = 0x10000, scoped, tag = 'input window, operand 5, single buffered']
    #allocation9 [shape = 's32[1]{0}', space=sflag, size = 0x4, scoped, tag = 'scoped memory for tpu_custom_call.1']
    #allocation10 [shape = 'u8[4096]{0}', space=vmem, size = 0x1000, scoped, tag = 'output window, operand 0, single buffered']
    %12 = vsyncpa [#allocation3], 0
    %13 = vsyncpa [#allocation6], 0
    %14 = vsyncpa [#allocation9], 0
    %15 = vsyncpa [#allocation4], 0
    // Predicated region
    $region2: #{tpu_custom_call.1} parent=1 // pred_check
      _
    $region3: #{tpu_custom_call.1} parent=1 // pred_check_branch
      %17 = sbr.rel (0) target = $region5
    $region4: #{tpu_custom_call.1} parent=1 // pred_region
      %s19 = ssub.s32 128, 128
      %20 = vsyncadd [#allocation3], %s19
      %s22 = sshll.u32 [#allocation2], 4
      %s23 = int_to_ptr.vmem [resolvable:$true] %s22
      %25 = dma.hbm_to_vmem [thread:$0]  %s0, 128, %s23, [#allocation3]
    $region5: #{tpu_custom_call.1} parent=1 // pred_fallthru
      _
    // Predicated region
    $region6: #{tpu_custom_call.1} parent=1 // pred_check
      _
    $region7: #{tpu_custom_call.1} parent=1 // pred_check_branch
      %27 = sbr.rel (0) target = $region9
    $region8: #{tpu_custom_call.1} parent=1 // pred_region
      %s29 = ssub.s32 2048, 2048
      %30 = vsyncadd [#allocation6], %s29
      %s31 = sshll.u32 [#allocation5], 4
      %s32 = int_to_ptr.vmem [resolvable:$true] %s31
      %37 = dma.hbm_to_vmem [thread:$0]  %s1, 2048, %s32, [#allocation6], 128, 128, 8
    $region9: #{tpu_custom_call.1} parent=1 // pred_fallthru
      _
    // Predicated region
    $region10: #{tpu_custom_call.1} parent=1 // pred_check
      _
    $region11: #{tpu_custom_call.1} parent=1 // pred_check_branch
      %39 = sbr.rel (0) target = $region13
    $region12: #{tpu_custom_call.1} parent=1 // pred_region
      _
    $region13: #{tpu_custom_call.1} parent=1 // pred_fallthru
      _
    // Predicated region
    $region14: #{tpu_custom_call.1} parent=1 // pred_check
      _
    $region15: #{tpu_custom_call.1} parent=1 // pred_check_branch
      %41 = sbr.rel (0) target = $region17
    $region16: #{tpu_custom_call.1} parent=1 // pred_region
      %s43 = ssub.s32 2048, 2048
      %44 = vsyncadd [#allocation6], %s43
      %s45 = sshll.u32 [#allocation7], 4
      %s46 = int_to_ptr.vmem [resolvable:$true] %s45
      %51 = dma.hbm_to_vmem [thread:$0]  %s3, 2048, %s46, [#allocation6], 128, 128, 8
    $region17: #{tpu_custom_call.1} parent=1 // pred_fallthru
      _
    // Predicated region
    $region18: #{tpu_custom_call.1} parent=1 // pred_check
      _
    $region19: #{tpu_custom_call.1} parent=1 // pred_check_branch
      %53 = sbr.rel (0) target = $region21
    $region20: #{tpu_custom_call.1} parent=1 // pred_region
      _
    $region21: #{tpu_custom_call.1} parent=1 // pred_fallthru
      _
    // Predicated region
    $region22: #{tpu_custom_call.1} parent=1 // pred_check
      _
    $region23: #{tpu_custom_call.1} parent=1 // pred_check_branch
      %55 = sbr.rel (0) target = $region25
    $region24: #{tpu_custom_call.1} parent=1 // pred_region
      %s57 = ssub.s32 2048, 2048
      %58 = vsyncadd [#allocation9], %s57
      %s59 = sshll.u32 [#allocation8], 4
      %s60 = int_to_ptr.vmem [resolvable:$true] %s59
      %65 = dma.hbm_to_vmem [thread:$0]  %s5, 2048, %s60, [#allocation9], 128, 128, 8
    $region25: #{tpu_custom_call.1} parent=1 // pred_fallthru
      _
    // Predicated region
    $region26: #{tpu_custom_call.1} parent=1 // pred_check
      _
    $region27: #{tpu_custom_call.1} parent=1 // pred_check_branch
      %67 = sbr.rel (0) target = $region29
    $region28: #{tpu_custom_call.1} parent=1 // pred_region
      _
    $region29: #{tpu_custom_call.1} parent=1 // pred_fallthru
      _
    // Predicated region
    $region30: #{tpu_custom_call.1} parent=1 // pred_check
      _
    $region31: #{tpu_custom_call.1} parent=1 // pred_check_branch
      %69 = sbr.rel (0) target = $region33
    $region32: #{tpu_custom_call.1} parent=1 // pred_region
      %70 = dma.done [#allocation3], 128
    $region33: #{tpu_custom_call.1} parent=1 // pred_fallthru
      _
    // Predicated region
    $region34: #{tpu_custom_call.1} parent=1 // pred_check
      _
    $region35: #{tpu_custom_call.1} parent=1 // pred_check_branch
      %72 = sbr.rel (0) target = $region37
    $region36: #{tpu_custom_call.1} parent=1 // pred_region
      %73 = dma.done [#allocation6], 2048
    $region37: #{tpu_custom_call.1} parent=1 // pred_fallthru
      _
    // Predicated region
    $region38: #{tpu_custom_call.1} parent=1 // pred_check
      _
    $region39: #{tpu_custom_call.1} parent=1 // pred_check_branch
      %75 = sbr.rel (0) target = $region41
    $region40: #{tpu_custom_call.1} parent=1 // pred_region
      %76 = dma.done [#allocation6], 2048
    $region41: #{tpu_custom_call.1} parent=1 // pred_fallthru
      _
    // Predicated region
    $region42: #{tpu_custom_call.1} parent=1 // pred_check
      _
    $region43: #{tpu_custom_call.1} parent=1 // pred_check_branch
      %78 = sbr.rel (0) target = $region45
    $region44: #{tpu_custom_call.1} parent=1 // pred_region
      %79 = dma.done [#allocation9], 2048
    $region45: #{tpu_custom_call.1} parent=1 // pred_fallthru
      _
    %v80 = vld [vmem:[#allocation5] sm:$0xff]
    %v81 = vld [vmem:[#allocation5 + $0x8] sm:$0xff]
    %v82 = vld [vmem:[#allocation5 + $0x10] sm:$0xff]
    %v83 = vld [vmem:[#allocation5 + $0x18] sm:$0xff]
    %v84 = vld [vmem:[#allocation5 + $0x20] sm:$0xff]
    %v85 = vld [vmem:[#allocation5 + $0x28] sm:$0xff]
    %v86 = vld [vmem:[#allocation5 + $0x30] sm:$0xff]
    %v87 = vld [vmem:[#allocation5 + $0x38] sm:$0xff]
    %v88 = vld [vmem:[#allocation5 + $0x40] sm:$0xff]
    %v89 = vld [vmem:[#allocation5 + $0x48] sm:$0xff]
    %v90 = vld [vmem:[#allocation5 + $0x50] sm:$0xff]
    %v91 = vld [vmem:[#allocation5 + $0x58] sm:$0xff]
    %v92 = vld [vmem:[#allocation5 + $0x60] sm:$0xff]
    %v93 = vld [vmem:[#allocation5 + $0x68] sm:$0xff]
    %v94 = vld [vmem:[#allocation5 + $0x70] sm:$0xff]
    %v95 = vld [vmem:[#allocation5 + $0x78] sm:$0xff]
    %v96 = vld [vmem:[#allocation7] sm:$0xff]
    %v97 = vld [vmem:[#allocation7 + $0x8] sm:$0xff]
    %v98 = vld [vmem:[#allocation7 + $0x10] sm:$0xff]
    %v99 = vld [vmem:[#allocation7 + $0x18] sm:$0xff]
    %v100 = vld [vmem:[#allocation7 + $0x20] sm:$0xff]
    %v101 = vld [vmem:[#allocation7 + $0x28] sm:$0xff]
    %v102 = vld [vmem:[#allocation7 + $0x30] sm:$0xff]
    %v103 = vld [vmem:[#allocation7 + $0x38] sm:$0xff]
    %v104 = vld [vmem:[#allocation7 + $0x40] sm:$0xff]
    %v105 = vld [vmem:[#allocation7 + $0x48] sm:$0xff]
    %v106 = vld [vmem:[#allocation7 + $0x50] sm:$0xff]
    %v107 = vld [vmem:[#allocation7 + $0x58] sm:$0xff]
    %v108 = vld [vmem:[#allocation7 + $0x60] sm:$0xff]
    %v109 = vld [vmem:[#allocation7 + $0x68] sm:$0xff]
    %v110 = vld [vmem:[#allocation7 + $0x70] sm:$0xff]
    %v111 = vld [vmem:[#allocation7 + $0x78] sm:$0xff]
    %v112 = vld [vmem:[#allocation8] sm:$0xff]
    %v113 = vld [vmem:[#allocation8 + $0x8] sm:$0xff]
    %v114 = vld [vmem:[#allocation8 + $0x10] sm:$0xff]
    %v115 = vld [vmem:[#allocation8 + $0x18] sm:$0xff]
    %v116 = vld [vmem:[#allocation8 + $0x20] sm:$0xff]
    %v117 = vld [vmem:[#allocation8 + $0x28] sm:$0xff]
    %v118 = vld [vmem:[#allocation8 + $0x30] sm:$0xff]
    %v119 = vld [vmem:[#allocation8 + $0x38] sm:$0xff]
    %v120 = vld [vmem:[#allocation8 + $0x40] sm:$0xff]
    %v121 = vld [vmem:[#allocation8 + $0x48] sm:$0xff]
    %v122 = vld [vmem:[#allocation8 + $0x50] sm:$0xff]
    %v123 = vld [vmem:[#allocation8 + $0x58] sm:$0xff]
    %v124 = vld [vmem:[#allocation8 + $0x60] sm:$0xff]
    %v125 = vld [vmem:[#allocation8 + $0x68] sm:$0xff]
    %v126 = vld [vmem:[#allocation8 + $0x70] sm:$0xff]
    %v127 = vld [vmem:[#allocation8 + $0x78] sm:$0xff]
    %v128 = vld [vmem:[%s2] sm:$0x1]
    %v129 = vld [vmem:[%s4] sm:$0x1]
    %v130 = vld [vmem:[%s6] sm:$0x1]
    %v131 = vld [vmem:[#allocation2] sm:$0xff]
    %v133 = vlaneseq
    %v134 = vshrl.u32 %v133, 7
    %v135 = vsub.s32 0, %v134
    %v136 = vrot.slane %v128, %v135
    %138 = vmatprep.subr.mxu0 0.0
    %139 = vmatpush1.msra.mxu0 %v95
    %140 = vmatprep.subr.mxu0 0.0
    %141 = vmatpush1.msra.mxu0 %v94
    %142 = vmatprep.subr.mxu0 0.0
    %143 = vmatpush1.msra.mxu0 %v93
    %144 = vmatprep.subr.mxu0 0.0
    %145 = vmatpush1.msra.mxu0 %v92
    %146 = vmatprep.subr.mxu0 0.0
    %147 = vmatpush1.msra.mxu0 %v91
    %148 = vmatprep.subr.mxu0 0.0
    %149 = vmatpush1.msra.mxu0 %v90
    %150 = vmatprep.subr.mxu0 0.0
    %151 = vmatpush1.msra.mxu0 %v89
    %152 = vmatprep.subr.mxu0 0.0
    %153 = vmatpush1.msra.mxu0 %v88
    %154 = vmatprep.subr.mxu0 0.0
    %155 = vmatpush1.msra.mxu0 %v87
    %156 = vmatprep.subr.mxu0 0.0
    %157 = vmatpush1.msra.mxu0 %v86
    %158 = vmatprep.subr.mxu0 0.0
    %159 = vmatpush1.msra.mxu0 %v85
    %160 = vmatprep.subr.mxu0 0.0
    %161 = vmatpush1.msra.mxu0 %v84
    %162 = vmatprep.subr.mxu0 0.0
    %163 = vmatpush1.msra.mxu0 %v83
    %164 = vmatprep.subr.mxu0 0.0
    %165 = vmatpush1.msra.mxu0 %v82
    %166 = vmatprep.subr.mxu0 0.0
    %167 = vmatpush1.msra.mxu0 %v81
    %168 = vmatprep.subr.mxu0 0.0
    %169 = vmatpush1.msra.mxu0 %v80
    %170 = vmatprep.subr.mxu0 0.0
    %171 = vmatpush2.msra.mxu0 0.0
    %172 = vmatprep.subr.mxu0 0.0
    %173 = vmatpush2.msra.mxu0 0.0
    %174 = vmatprep.subr.mxu0 0.0
    %175 = vmatpush2.msra.mxu0 0.0
    %176 = vmatprep.subr.mxu0 0.0
    %177 = vmatpush2.msra.mxu0 0.0
    %178 = vmatprep.subr.mxu0 0.0
    %179 = vmatpush2.msra.mxu0 0.0
    %180 = vmatprep.subr.mxu0 0.0
    %181 = vmatpush2.msra.mxu0 0.0
    %182 = vmatprep.subr.mxu0 0.0
    %183 = vmatpush2.msra.mxu0 0.0
    %184 = vmatprep.subr.mxu0 0.0
    %185 = vmatpush2.msra.mxu0 0.0
    %186 = vmatprep.subr.mxu0 0.0
    %187 = vmatpush2.msra.mxu0 0.0
    %188 = vmatprep.subr.mxu0 0.0
    %189 = vmatpush2.msra.mxu0 0.0
    %190 = vmatprep.subr.mxu0 0.0
    %191 = vmatpush2.msra.mxu0 0.0
    %192 = vmatprep.subr.mxu0 0.0
    %193 = vmatpush2.msra.mxu0 0.0
    %194 = vmatprep.subr.mxu0 0.0
    %195 = vmatpush2.msra.mxu0 0.0
    %196 = vmatprep.subr.mxu0 0.0
    %197 = vmatpush2.msra.mxu0 0.0
    %198 = vmatprep.subr.mxu0 0.0
    %199 = vmatpush2.msra.mxu0 0.0
    %200 = vmatprep.subr.mxu0 0.0
    %201 = vmatpush2.msra.mxu0 0.0
    %202 = vmatprep.mubr.f32.mxu0 0.0
    %203 = vmatmul.mubr.f32.gmra.mxu0 %v131
    %v204 = vpop.f32.mrf.mxu0
    %v205 = vadd.f32 %v136, %v204
    %v206 = vpop.f32.mrf.mxu0
    %207 = vdwg.mxu0
    %v208 = vmul.f32 %v205, 0.01
    %v209 = vmax.f32 %v205, %v208
    %210 = vadd.xlane.f32.xlu0 %v209
    %v211 = vpop.xlane.xlu0 %210
    %v212 = vrcp.pop 128.0
    %v213 = vmul.f32 %v211, %v212
    %v214 = vsub.f32 %v209, %v213
    %v215 = vmul.f32 %v214, %v214
    %216 = vadd.xlane.f32.xlu0 %v215
    %v217 = vpop.xlane.xlu0 %216
    %v218 = vmul.f32 %v217, %v212
    %v219 = vadd.f32 %v218, 1e-05
    %v220 = vrsqrt.pop %v219
    %v221 = vmul.f32 %v214, %v220
    %v223 = vlaneseq
    %v224 = vshrl.u32 %v223, 7
    %v225 = vsub.s32 0, %v224
    %v226 = vrot.slane %v129, %v225
    %228 = vmatprep.subr.mxu0 0.0
    %229 = vmatpush1.msra.mxu0 %v111
    %230 = vmatprep.subr.mxu0 0.0
    %231 = vmatpush1.msra.mxu0 %v110
    %232 = vmatprep.subr.mxu0 0.0
    %233 = vmatpush1.msra.mxu0 %v109
    %234 = vmatprep.subr.mxu0 0.0
    %235 = vmatpush1.msra.mxu0 %v108
    %236 = vmatprep.subr.mxu0 0.0
    %237 = vmatpush1.msra.mxu0 %v107
    %238 = vmatprep.subr.mxu0 0.0
    %239 = vmatpush1.msra.mxu0 %v106
    %240 = vmatprep.subr.mxu0 0.0
    %241 = vmatpush1.msra.mxu0 %v105
    %242 = vmatprep.subr.mxu0 0.0
    %243 = vmatpush1.msra.mxu0 %v104
    %244 = vmatprep.subr.mxu0 0.0
    %245 = vmatpush1.msra.mxu0 %v103
    %246 = vmatprep.subr.mxu0 0.0
    %247 = vmatpush1.msra.mxu0 %v102
    %248 = vmatprep.subr.mxu0 0.0
    %249 = vmatpush1.msra.mxu0 %v101
    %250 = vmatprep.subr.mxu0 0.0
    %251 = vmatpush1.msra.mxu0 %v100
    %252 = vmatprep.subr.mxu0 0.0
    %253 = vmatpush1.msra.mxu0 %v99
    %254 = vmatprep.subr.mxu0 0.0
    %255 = vmatpush1.msra.mxu0 %v98
    %256 = vmatprep.subr.mxu0 0.0
    %257 = vmatpush1.msra.mxu0 %v97
    %258 = vmatprep.subr.mxu0 0.0
    %259 = vmatpush1.msra.mxu0 %v96
    %260 = vmatprep.subr.mxu0 0.0
    %261 = vmatpush2.msra.mxu0 0.0
    %262 = vmatprep.subr.mxu0 0.0
    %263 = vmatpush2.msra.mxu0 0.0
    %264 = vmatprep.subr.mxu0 0.0
    %265 = vmatpush2.msra.mxu0 0.0
    %266 = vmatprep.subr.mxu0 0.0
    %267 = vmatpush2.msra.mxu0 0.0
    %268 = vmatprep.subr.mxu0 0.0
    %269 = vmatpush2.msra.mxu0 0.0
    %270 = vmatprep.subr.mxu0 0.0
    %271 = vmatpush2.msra.mxu0 0.0
    %272 = vmatprep.subr.mxu0 0.0
    %273 = vmatpush2.msra.mxu0 0.0
    %274 = vmatprep.subr.mxu0 0.0
    %275 = vmatpush2.msra.mxu0 0.0
    %276 = vmatprep.subr.mxu0 0.0
    %277 = vmatpush2.msra.mxu0 0.0
    %278 = vmatprep.subr.mxu0 0.0
    %279 = vmatpush2.msra.mxu0 0.0
    %280 = vmatprep.subr.mxu0 0.0
    %281 = vmatpush2.msra.mxu0 0.0
    %282 = vmatprep.subr.mxu0 0.0
    %283 = vmatpush2.msra.mxu0 0.0
    %284 = vmatprep.subr.mxu0 0.0
    %285 = vmatpush2.msra.mxu0 0.0
    %286 = vmatprep.subr.mxu0 0.0
    %287 = vmatpush2.msra.mxu0 0.0
    %288 = vmatprep.subr.mxu0 0.0
    %289 = vmatpush2.msra.mxu0 0.0
    %290 = vmatprep.subr.mxu0 0.0
    %291 = vmatpush2.msra.mxu0 0.0
    %292 = vmatprep.mubr.f32.mxu0 0.0
    %293 = vmatmul.mubr.f32.gmra.mxu0 %v221
    %v294 = vpop.f32.mrf.mxu0
    %v295 = vadd.f32 %v226, %v294
    %v296 = vpop.f32.mrf.mxu0
    %297 = vdwg.mxu0
    %v298 = vmul.f32 %v295, 0.01
    %v299 = vmax.f32 %v295, %v298
    %300 = vadd.xlane.f32.xlu0 %v299
    %v301 = vpop.xlane.xlu0 %300
    %v302 = vmul.f32 %v301, %v212
    %v303 = vsub.f32 %v299, %v302
    %v304 = vmul.f32 %v303, %v303
    %305 = vadd.xlane.f32.xlu0 %v304
    %v306 = vpop.xlane.xlu0 %305
    %v307 = vmul.f32 %v306, %v212
    %v308 = vadd.f32 %v307, 1e-05
    %v309 = vrsqrt.pop %v308
    %v310 = vmul.f32 %v303, %v309
    %v312 = vlaneseq
    %v313 = vshrl.u32 %v312, 7
    %v314 = vsub.s32 0, %v313
    %v315 = vrot.slane %v130, %v314
    %317 = vmatprep.subr.mxu0 0.0
    %318 = vmatpush1.msra.mxu0 %v127
    %319 = vmatprep.subr.mxu0 0.0
    %320 = vmatpush1.msra.mxu0 %v126
    %321 = vmatprep.subr.mxu0 0.0
    %322 = vmatpush1.msra.mxu0 %v125
    %323 = vmatprep.subr.mxu0 0.0
    %324 = vmatpush1.msra.mxu0 %v124
    %325 = vmatprep.subr.mxu0 0.0
    %326 = vmatpush1.msra.mxu0 %v123
    %327 = vmatprep.subr.mxu0 0.0
    %328 = vmatpush1.msra.mxu0 %v122
    %329 = vmatprep.subr.mxu0 0.0
    %330 = vmatpush1.msra.mxu0 %v121
    %331 = vmatprep.subr.mxu0 0.0
    %332 = vmatpush1.msra.mxu0 %v120
    %333 = vmatprep.subr.mxu0 0.0
    %334 = vmatpush1.msra.mxu0 %v119
    %335 = vmatprep.subr.mxu0 0.0
    %336 = vmatpush1.msra.mxu0 %v118
    %337 = vmatprep.subr.mxu0 0.0
    %338 = vmatpush1.msra.mxu0 %v117
    %339 = vmatprep.subr.mxu0 0.0
    %340 = vmatpush1.msra.mxu0 %v116
    %341 = vmatprep.subr.mxu0 0.0
    %342 = vmatpush1.msra.mxu0 %v115
    %343 = vmatprep.subr.mxu0 0.0
    %344 = vmatpush1.msra.mxu0 %v114
    %345 = vmatprep.subr.mxu0 0.0
    %346 = vmatpush1.msra.mxu0 %v113
    %347 = vmatprep.subr.mxu0 0.0
    %348 = vmatpush1.msra.mxu0 %v112
    %349 = vmatprep.subr.mxu0 0.0
    %350 = vmatpush2.msra.mxu0 0.0
    %351 = vmatprep.subr.mxu0 0.0
    %352 = vmatpush2.msra.mxu0 0.0
    %353 = vmatprep.subr.mxu0 0.0
    %354 = vmatpush2.msra.mxu0 0.0
    %355 = vmatprep.subr.mxu0 0.0
    %356 = vmatpush2.msra.mxu0 0.0
    %357 = vmatprep.subr.mxu0 0.0
    %358 = vmatpush2.msra.mxu0 0.0
    %359 = vmatprep.subr.mxu0 0.0
    %360 = vmatpush2.msra.mxu0 0.0
    %361 = vmatprep.subr.mxu0 0.0
    %362 = vmatpush2.msra.mxu0 0.0
    %363 = vmatprep.subr.mxu0 0.0
    %364 = vmatpush2.msra.mxu0 0.0
    %365 = vmatprep.subr.mxu0 0.0
    %366 = vmatpush2.msra.mxu0 0.0
    %367 = vmatprep.subr.mxu0 0.0
    %368 = vmatpush2.msra.mxu0 0.0
    %369 = vmatprep.subr.mxu0 0.0
    %370 = vmatpush2.msra.mxu0 0.0
    %371 = vmatprep.subr.mxu0 0.0
    %372 = vmatpush2.msra.mxu0 0.0
    %373 = vmatprep.subr.mxu0 0.0
    %374 = vmatpush2.msra.mxu0 0.0
    %375 = vmatprep.subr.mxu0 0.0
    %376 = vmatpush2.msra.mxu0 0.0
    %377 = vmatprep.subr.mxu0 0.0
    %378 = vmatpush2.msra.mxu0 0.0
    %379 = vmatprep.subr.mxu0 0.0
    %380 = vmatpush2.msra.mxu0 0.0
    %381 = vmatprep.mubr.f32.mxu0 0.0
    %382 = vmatmul.mubr.f32.gmra.mxu0 %v310
    %v383 = vpop.f32.mrf.mxu0
    %v384 = vadd.f32 %v315, %v383
    %v385 = vpop.f32.mrf.mxu0
    %386 = vdwg.mxu0
    %387 = vst [vmem:[#allocation10] sm:$0xff] %v384
    // Predicated region
    $region46: #{tpu_custom_call.1} parent=1 // pred_check
      _
    $region47: #{tpu_custom_call.1} parent=1 // pred_check_branch
      %389 = sbr.rel (0) target = $region49
    $region48: #{tpu_custom_call.1} parent=1 // pred_region
      %s391 = ssub.s32 128, 128
      %392 = vsyncadd [#allocation4], %s391
      %s394 = sshll.u32 [#allocation10], 4
      %s395 = int_to_ptr.vmem [resolvable:$true] %s394
      %397 = dma.vmem_to_hbm [thread:$0]  %s395, 128, %s7, [#allocation4]
    $region49: #{tpu_custom_call.1} parent=1 // pred_fallthru
      _
    // Predicated region
    $region50: #{tpu_custom_call.1} parent=1 // pred_check
      _
    $region51: #{tpu_custom_call.1} parent=1 // pred_check_branch
      %399 = sbr.rel (0) target = $region53
    $region52: #{tpu_custom_call.1} parent=1 // pred_region
      %400 = dma.done [#allocation4], 128
    $region53: #{tpu_custom_call.1} parent=1 // pred_fallthru
      _
    %401 = vsyncpa [#allocation3], 1
    %402 = vsyncpa [#allocation6], 1
    %403 = vsyncpa [#allocation9], 1
    %404 = vsyncpa [#allocation4], 1

</llo_original>
